<compile_context>
chip_gen: v5e
topology: v5e:2x2
jax: 0.10.0
libtpu: 0.0.40
codegen_flags: <defaults>
</compile_context>

<pallas_src>
import jax
import jax.numpy as jnp
from jax.experimental import pallas as pl
from jax.experimental.pallas import tpu as pltpu


def _cdiv(a, b):
    return -(-a // b)


def _round_up(a, b):
    return _cdiv(a, b) * b


# ----------------------------- Pallas kernel ---------------------------------
def _deform_matmul_kernel(inv_scale_ref, zp_ref, cols_ref, w_ref, b_ref, out_ref):
    # cols_ref block: (1, 1, K, TM) bf16   (K-major -> result lane-dense in TM)
    # w_ref    block: (1, Cout_g, K) bf16  (stays resident across all n and m)
    # b_ref    block: (1, Cout_g, 1) f32
    # out_ref  block: (1, 1, Cout_g, TM) int8
    acc = jnp.dot(w_ref[0], cols_ref[0, 0],
                  preferred_element_type=jnp.float32)           # (Cout_g, TM) on the MXU
    acc = acc + b_ref[0]                                        # bias broadcast over TM
    q = jnp.round(acc * inv_scale_ref[0]) + zp_ref[0]           # exact precomputed 1/scale
    out_ref[0, 0] = jnp.clip(q, -128.0, 127.0).astype(jnp.int8)


def _vmem_capacity_bytes():
    try:
        cap = getattr(pltpu.get_tpu_info(), "vmem_capacity_bytes", None)
        if cap:
            return int(cap)
    except Exception:
        pass
    return 64 * 1024 * 1024  # conservative default (v7x per-TensorCore VMEM)


def _pick_spatial_tile(M, K, Cg):
    """Pick (tm, Mp, vmem_limit) so double-buffered blocks fit the VMEM budget.

    Per-step footprint (double buffered): 2*(2*K + Cg)*tm bytes for cols(bf16)+out(int8)
    plus 2*(2*Cg*K + 4*Cg) bytes for weight(bf16)+bias(f32).
    """
    cap = _vmem_capacity_bytes()
    vmem_limit = int(min(max(cap // 2, 32 * 1024 * 1024), 96 * 1024 * 1024))
    budget = int(vmem_limit * 0.75)            # headroom for compiler scratch
    fixed = 2 * (2 * Cg * K + 4 * Cg)
    per_col = 2 * (2 * K + Cg)
    tm_budget = max(128, (budget - fixed) // max(per_col, 1))
    tm_budget = min(tm_budget, 4096)           # perf review: 1024-4096 range
    tm_budget = max((tm_budget // 128) * 128, 128)

    Mp128 = _round_up(M, 128)
    n_tiles = _cdiv(Mp128, tm_budget)
    tm = _round_up(_cdiv(Mp128, n_tiles), 128)  # tm divides Mp -> waste < 128 per tile
    Mp = tm * n_tiles
    return tm, Mp, vmem_limit


def _pallas_deform_matmul(cols, w_gck, bias_gc1, inv_scale, zp):
    """cols: (N, G, K, M) bf16; w_gck: (G, Cout_g, K) bf16; bias: (G, Cout_g, 1) f32.

    Returns int8 (N, G, Cout_g, Mp) with Mp = n_tiles * tm >= M.
    """
    N, G, K, M = cols.shape
    Cg = w_gck.shape[1]
    tm, Mp, vmem_limit = _pick_spatial_tile(M, K, Cg)
    if Mp != M:
        cols = jnp.pad(cols, ((0, 0), (0, 0), (0, 0), (0, Mp - M)))

    flops = 2 * G * N * Mp * K * Cg
    bytes_accessed = (N * G * K * Mp * 2          # bf16 cols read
                      + G * Cg * K * 2            # bf16 weight read (resident per g)
                      + G * Cg * 4                # bias read
                      + N * G * Cg * Mp)          # int8 output write

    out = pl.pallas_call(
        _deform_matmul_kernel,
        out_shape=jax.ShapeDtypeStruct((N, G, Cg, Mp), jnp.int8),
        # G outermost so the (g,0,0)-indexed weight/bias blocks are fetched once
        # per group instead of once per (n, g).
        grid=(G, N, Mp // tm),
        in_specs=[
            pl.BlockSpec(memory_space=pltpu.MemorySpace.SMEM),            # 1/out_scale (1,)
            pl.BlockSpec(memory_space=pltpu.MemorySpace.SMEM),            # out_zero_point (1,)
            # Default 2-deep pipeline; sweep pl.Buffered(3) here only if
            # profiling shows exposed cols DMA (costs one extra K*tm*2B buffer).
            pl.BlockSpec((1, 1, K, tm), lambda g, n, m: (n, g, 0, m)),    # cols (bf16)
            pl.BlockSpec((1, Cg, K), lambda g, n, m: (g, 0, 0)),          # weight (bf16)
            pl.BlockSpec((1, Cg, 1), lambda g, n, m: (g, 0, 0)),          # bias (f32)
        ],
        out_specs=pl.BlockSpec((1, 1, Cg, tm), lambda g, n, m: (n, g, 0, m)),
        compiler_params=pltpu.CompilerParams(
            dimension_semantics=("parallel", "parallel", "parallel"),
            vmem_limit_bytes=vmem_limit),
        cost_estimate=pl.CostEstimate(flops=flops, transcendentals=0,
                                      bytes_accessed=bytes_accessed),
    )(inv_scale, zp, cols, w_gck, bias_gc1)
    return out  # (N, G, Cg, Mp)


# --------------------------- JAX glue: deform im2col --------------------------
def _deform_im2col(x, offset, mask, kernel_size, stride, padding, dilation, groups):
    """Bilinear-sampled im2col for deformable conv v2 (torchvision convention).

    Returns cols of shape (N, G, Cin_g*kH*kW, Ho*Wo) in bf16 (K-major, no transpose:
    the Pallas BlockSpec handles the group/batch permutation).
    """
    N, C, H, W = x.shape
    kH, kW = kernel_size
    sH, sW = stride
    pH, pW = padding
    dH, dW = dilation
    K2 = kH * kW
    off_groups = offset.shape[1] // (2 * K2)
    ch_per_og = C // off_groups
    Ho = (H + 2 * pH - dH * (kH - 1) - 1) // sH + 1
    Wo = (W + 2 * pW - dW * (kW - 1) - 1) // sW + 1

    off = offset.reshape(N, off_groups, K2, 2, Ho, Wo)
    dy = off[:, :, :, 0]                              # (N, OG, K2, Ho, Wo)
    dx = off[:, :, :, 1]

    kh = jnp.arange(K2) // kW
    kw = jnp.arange(K2) % kW
    base_y = (jnp.arange(Ho) * sH - pH)[None, :] + (kh * dH)[:, None]   # (K2, Ho)
    base_x = (jnp.arange(Wo) * sW - pW)[None, :] + (kw * dW)[:, None]   # (K2, Wo)

    py = base_y[None, None, :, :, None].astype(jnp.float32) + dy        # (N, OG, K2, Ho, Wo)
    px = base_x[None, None, :, None, :].astype(jnp.float32) + dx

    y0 = jnp.floor(py)
    x0 = jnp.floor(px)
    wy1 = py - y0
    wy0 = 1.0 - wy1
    wx1 = px - x0
    wx0 = 1.0 - wx1

    L = K2 * Ho * Wo

    # Stack the four bilinear corners on one axis and fetch them with a single
    # take_along_axis (1 XLA gather pass instead of 4); indices/weights broadcast
    # over the per-offset-group channel axis instead of being materialized per channel.
    ys = jnp.stack([y0, y0, y0 + 1.0, y0 + 1.0], axis=2)                 # (N, OG, 4, K2, Ho, Wo)
    xs = jnp.stack([x0, x0 + 1.0, x0, x0 + 1.0], axis=2)
    ws = jnp.stack([wy0 * wx0, wy0 * wx1, wy1 * wx0, wy1 * wx1], axis=2)

    valid = (ys >= 0) & (ys <= H - 1) & (xs >= 0) & (xs <= W - 1)
    ws = ws * valid.astype(jnp.float32)
    yi = jnp.clip(ys, 0, H - 1).astype(jnp.int32)
    xi = jnp.clip(xs, 0, W - 1).astype(jnp.int32)
    idx = (yi * W + xi).reshape(N, off_groups, 1, 4 * L)                 # broadcast over channels

    flat = x.reshape(N, off_groups, ch_per_og, H * W)
    vals = jnp.take_along_axis(flat, idx, axis=3)                        # (N, OG, ch, 4*L)
    vals = vals.reshape(N, off_groups, ch_per_og, 4, K2, Ho, Wo)
    v = jnp.sum(vals * ws[:, :, None], axis=3)                           # (N, OG, ch, K2, Ho, Wo)

    if mask is not None:
        v = v * mask.reshape(N, off_groups, 1, K2, Ho, Wo)

    G = groups
    Cin_g = C // G
    M = Ho * Wo
    # (N, OG, ch, K2, Ho, Wo) -> (N, C, K2, M) -> (N, G, Cin_g*K2, M): pure reshapes,
    # both (OG, ch) and (G, Cin_g) are contiguous splits of C.
    cols = v.reshape(N, C, K2, M).reshape(N, G, Cin_g * K2, M)
    return cols.astype(jnp.bfloat16), Ho, Wo


# ------------------------------ Module wrapper --------------------------------
class DeformConv2d:
    """JAX/Pallas equivalent of horizon quantized DeformConv2d (qint8 output)."""

    def __init__(self, in_channels, out_channels, kernel_size, stride=1, padding=0,
                 dilation=1, groups=1, bias=True, *, key):
        assert in_channels % groups == 0 and out_channels % groups == 0
        self.in_channels = in_channels
        self.out_channels = out_channels
        self.kernel_size = (kernel_size, kernel_size)
        self.stride = (stride, stride)
        self.padding = (padding, padding)
        self.dilation = (dilation, dilation)
        self.groups = groups
        kw, kb = jax.random.split(key)
        # deterministic synthetic "checkpoint"
        self.weight = 0.1 * jax.random.normal(
            kw, (out_channels, in_channels // groups, *self.kernel_size), jnp.float32)
        self.bias = (0.05 * jax.random.normal(kb, (out_channels,), jnp.float32)
                     if bias else jnp.zeros((out_channels,), jnp.float32))
        self.out_scale = jnp.array([0.05], jnp.float32)       # buffer out_scale
        self.out_zero_point = jnp.array([0.0], jnp.float32)   # buffer out_zero_point

    def __call__(self, x, offset, mask=None):
        # x/offset/mask are dequantized float views of the input QTensors.
        cols, Ho, Wo = _deform_im2col(
            x, offset, mask, self.kernel_size, self.stride, self.padding,
            self.dilation, self.groups)                                 # (N, G, K, M) bf16
        G = self.groups
        Cout_g = self.out_channels // G
        K = cols.shape[2]
        N = x.shape[0]
        M = Ho * Wo

        w_gck = self.weight.reshape(G, Cout_g, K).astype(jnp.bfloat16)  # (G, Cout_g, K)
        b_gc1 = self.bias.reshape(G, Cout_g, 1)
        inv_scale = (1.0 / self.out_scale).astype(jnp.float32)          # exact precomputed f32
        zp = self.out_zero_point.astype(jnp.float32)

        q = _pallas_deform_matmul(cols, w_gck, b_gc1, inv_scale, zp)
        # (N, G, Cout_g, Mp) int8; padded spatial tail (if any) is sliced off, so padded
        # columns cannot alias real output locations.
        q_int8 = q[..., :M].reshape(N, self.out_channels, Ho, Wo)
        deq = (q_int8.astype(jnp.float32) - self.out_zero_point[0]) * self.out_scale[0]
        return q_int8, deq


# ----------------------------------- main --------------------------------------
if __name__ == "__main__":
    key = jax.random.PRNGKey(0)
    k_mod, k_x, k_off, k_mask = jax.random.split(key, 4)

    N, C_in, H, W = 2, 4, 16, 16
    C_out, kH, stride, pad = 8, 3, 1, 1

    mod = DeformConv2d(C_in, C_out, kH, stride=stride, padding=pad,
                       dilation=1, groups=1, bias=True, key=k_mod)

    # Simulate QTensor inputs: quantize to int8, then dequantize (scale, zp=0).
    x_f = jax.random.normal(k_x, (N, C_in, H, W), jnp.float32)
    x_scale = 0.02
    x = jnp.clip(jnp.round(x_f / x_scale), -128, 127) * x_scale

    off_f = 1.5 * jax.random.normal(k_off, (N, 2 * kH * kH, H, W), jnp.float32)
    off_scale = 0.01
    offset = jnp.clip(jnp.round(off_f / off_scale), -128, 127) * off_scale

    mask_f = jax.nn.sigmoid(jax.random.normal(k_mask, (N, kH * kH, H, W), jnp.float32))
    mask_scale = 1.0 / 128.0
    mask = jnp.clip(jnp.round(mask_f / mask_scale), -128, 127) * mask_scale

    q_out, deq_out = mod(x, offset, mask)
    jax.block_until_ready(q_out)

    # Cross-check the Pallas matmul/requantize path against a pure-JAX reference
    # using the same bf16 columns/weights, but with an independent divide-based
    # requantize (tolerance <=1 absorbs the 1-ulp inv-scale vs divide boundary cases).
    cols, Ho, Wo = _deform_im2col(x, offset, mask, mod.kernel_size, mod.stride,
                                  mod.padding, mod.dilation, mod.groups)
    G = mod.groups
    Cout_g = C_out // G
    w_ref = mod.weight.reshape(G, Cout_g, -1).astype(jnp.bfloat16).astype(jnp.float32)
    ref = jnp.einsum("gck,ngkm->ngcm", w_ref, cols.astype(jnp.float32))
    ref = ref + mod.bias.reshape(1, G, Cout_g, 1)
    ref_q = jnp.clip(jnp.round(ref / mod.out_scale[0]) + mod.out_zero_point[0], -128, 127)
    ref_q = ref_q.reshape(N, C_out, Ho, Wo).astype(jnp.int8)

    assert q_out.shape == (N, C_out, H, W) and q_out.dtype == jnp.int8
    max_diff = int(jnp.max(jnp.abs(q_out.astype(jnp.int32) - ref_q.astype(jnp.int32))))
    assert max_diff <= 1, f"max |q - ref_q| = {max_diff}"

    print("KERNEL_OK")
</pallas_src>

<mosaic_0001>
module attributes {stable_mosaic.version = 11 : i64} {
  func.func @_deform_matmul_kernel(%arg0: i32, %arg1: i32, %arg2: i32, %arg3: memref<1xf32, #tpu.memory_space<smem>>, %arg4: memref<1xf32, #tpu.memory_space<smem>>, %arg5: memref<1x1x36x256xbf16, #tpu.memory_space<vmem>>, %arg6: memref<1x8x36xbf16, #tpu.memory_space<vmem>>, %arg7: memref<1x8x1xf32, #tpu.memory_space<vmem>>, %arg8: memref<1x1x8x256xi8, #tpu.memory_space<vmem>>) attributes {dimension_semantics = [#tpu.dimension_semantics<parallel>, #tpu.dimension_semantics<parallel>, #tpu.dimension_semantics<parallel>], iteration_bounds = array<i64: 1, 2, 1>, scalar_prefetch = 0 : i64, scratch_operands = 0 : i64, tpu.core_type = #tpu.core_type<tc>, window_params = [{transform_indices = @transform_0, window_bounds = array<i64: 1>}, {transform_indices = @transform_1, window_bounds = array<i64: 1>}, {transform_indices = @transform_2, window_bounds = array<i64: 1, 1, 36, 256>}, {transform_indices = @transform_3, window_bounds = array<i64: 1, 8, 36>}, {transform_indices = @transform_4, window_bounds = array<i64: 1, 8, 1>}, {transform_indices = @transform_5, window_bounds = array<i64: 1, 1, 8, 256>}]} {
    %c0 = arith.constant 0 : index
    %c0_0 = arith.constant 0 : index
    %c0_1 = arith.constant 0 : index
    %0 = vector.load %arg6[%c0, %c0_0, %c0_1] : memref<1x8x36xbf16, #tpu.memory_space<vmem>>, vector<1x8x36xbf16>
    %1 = vector.shape_cast %0 : vector<1x8x36xbf16> to vector<8x36xbf16>
    %c0_2 = arith.constant 0 : index
    %c0_3 = arith.constant 0 : index
    %c0_4 = arith.constant 0 : index
    %c0_5 = arith.constant 0 : index
    %2 = vector.load %arg5[%c0_2, %c0_3, %c0_4, %c0_5] : memref<1x1x36x256xbf16, #tpu.memory_space<vmem>>, vector<1x1x36x256xbf16>
    %3 = vector.shape_cast %2 : vector<1x1x36x256xbf16> to vector<36x256xbf16>
    %cst = arith.constant dense<0.000000e+00> : vector<8x256xf32>
    %4 = tpu.matmul %1, %3, %cst {dimension_numbers = #tpu.dot_dimension_numbers<[1], [0], [0], [1], [0, 0, 1, 1], [], []>} : vector<8x36xbf16>, vector<36x256xbf16>, vector<8x256xf32> -> vector<8x256xf32>
    %c0_6 = arith.constant 0 : index
    %c0_7 = arith.constant 0 : index
    %c0_8 = arith.constant 0 : index
    %5 = vector.load %arg7[%c0_6, %c0_7, %c0_8] : memref<1x8x1xf32, #tpu.memory_space<vmem>>, vector<1x8x1xf32>
    %6 = vector.shape_cast %5 : vector<1x8x1xf32> to vector<8x1xf32>
    %7 = vector.broadcast %6 : vector<8x1xf32> to vector<8x256xf32>
    %8 = arith.addf %4, %7 : vector<8x256xf32>
    %c0_9 = arith.constant 0 : index
    %9 = memref.load %arg3[%c0_9] : memref<1xf32, #tpu.memory_space<smem>>
    %10 = vector.broadcast %9 : f32 to vector<8x256xf32>
    %11 = arith.mulf %8, %10 : vector<8x256xf32>
    %12 = math.roundeven %11 : vector<8x256xf32>
    %c0_10 = arith.constant 0 : index
    %13 = memref.load %arg4[%c0_10] : memref<1xf32, #tpu.memory_space<smem>>
    %14 = vector.broadcast %13 : f32 to vector<8x256xf32>
    %15 = arith.addf %12, %14 : vector<8x256xf32>
    %cst_11 = arith.constant -1.280000e+02 : f32
    %cst_12 = arith.constant 1.270000e+02 : f32
    %16 = vector.broadcast %cst_11 : f32 to vector<8x256xf32>
    %17 = arith.maximumf %16, %15 : vector<8x256xf32>
    %18 = vector.broadcast %cst_12 : f32 to vector<8x256xf32>
    %19 = arith.minimumf %18, %17 : vector<8x256xf32>
    %20 = arith.fptosi %19 : vector<8x256xf32> to vector<8x256xi8>
    %c0_13 = arith.constant 0 : index
    %c0_14 = arith.constant 0 : index
    %c0_15 = arith.constant 0 : index
    %c0_16 = arith.constant 0 : index
    %21 = vector.load %arg8[%c0_13, %c0_14, %c0_15, %c0_16] : memref<1x1x8x256xi8, #tpu.memory_space<vmem>>, vector<1x1x8x256xi8>
    %22 = vector.shape_cast %21 : vector<1x1x8x256xi8> to vector<8x256xi8>
    %23 = vector.shape_cast %20 : vector<8x256xi8> to vector<1x1x8x256xi8>
    tpu.vector_store %arg8[%c0_13, %c0_14, %c0_15, %c0_16], %23 {strides = array<i32>} : memref<1x1x8x256xi8, #tpu.memory_space<vmem>>, vector<1x1x8x256xi8>,
    return
  }
  func.func @transform_0(%arg0: i32, %arg1: i32, %arg2: i32) -> i32 {
    %c0_i32 = arith.constant 0 : i32
    %c0_i32_0 = arith.constant 0 : i32
    return %c0_i32 : i32
  }
  func.func @transform_1(%arg0: i32, %arg1: i32, %arg2: i32) -> i32 {
    %c0_i32 = arith.constant 0 : i32
    %c0_i32_0 = arith.constant 0 : i32
    return %c0_i32 : i32
  }
  func.func @transform_2(%arg0: i32, %arg1: i32, %arg2: i32) -> (i32, i32, i32, i32) {
    %c0_i32 = arith.constant 0 : i32
    %c0_i32_0 = arith.constant 0 : i32
    return %arg1, %arg0, %c0_i32, %arg2 : i32, i32, i32, i32
  }
  func.func @transform_3(%arg0: i32, %arg1: i32, %arg2: i32) -> (i32, i32, i32) {
    %c0_i32 = arith.constant 0 : i32
    %c0_i32_0 = arith.constant 0 : i32
    %c0_i32_1 = arith.constant 0 : i32
    return %arg0, %c0_i32, %c0_i32_0 : i32, i32, i32
  }
  func.func @transform_4(%arg0: i32, %arg1: i32, %arg2: i32) -> (i32, i32, i32) {
    %c0_i32 = arith.constant 0 : i32
    %c0_i32_0 = arith.constant 0 : i32
    %c0_i32_1 = arith.constant 0 : i32
    return %arg0, %c0_i32, %c0_i32_0 : i32, i32, i32
  }
  func.func @transform_5(%arg0: i32, %arg1: i32, %arg2: i32) -> (i32, i32, i32, i32) {
    %c0_i32 = arith.constant 0 : i32
    %c0_i32_0 = arith.constant 0 : i32
    return %arg1, %arg0, %c0_i32, %arg2 : i32, i32, i32, i32
  }
}

</mosaic_0001>

<llo_original>
// kernel: tpu_custom_call.1
$region0: #{tpu_custom_call.1}
  #allocation0 [shape = 'u32[]', space=smem, size = 0x4, offset = 0x4, fixed_abs, tag = 'smem constant byte address 0x4 - core index']
  #allocation1 [shape = 'u32[72,128]{1,0:T(1,128)}', space=vmem, size = 0x9000, scoped, tag = 'internal scratch']
  #allocation2 [shape = 'f32[1]{0:T(128)S(6)}', space=smem, size = 0x200, scoped, tag = 'scoped memory for tpu_custom_call.1']
  #allocation3 [shape = 'f32[1]{0:T(128)S(6)}', space=smem, size = 0x200, scoped, tag = 'scoped memory for tpu_custom_call.1']
  %s0 = inlined_call_operand.<no memory space> [shape: f32[1], index: 0, kind: input, shape index: {}]
  %s1 = inlined_call_operand.<no memory space> [shape: f32[1], index: 1, kind: input, shape index: {}]
  %s2 = inlined_call_operand.vmem [shape: bf16[2,1,36,256], index: 2, kind: input, shape index: {}]
  %s3 = inlined_call_operand.vmem [shape: bf16[1,8,36], index: 3, kind: input, shape index: {}]
  %s4 = inlined_call_operand.vmem [shape: f32[1,8,1], index: 4, kind: input, shape index: {}]
  %s5 = inlined_call_operand.hbm [shape: s8[2,1,8,256], index: 5, kind: output, shape index: {}]
  %s6 = sld [smem:[#allocation0]]
  $region53: #{tpu_custom_call.1} parent=0
    _
  %s8 = ssub.s32 1, %s6
  %s9 = scalar_select 0, %s8, %s6
  %10 = sst [smem:[#allocation2]] %s0
  %11 = sst [smem:[#allocation3]] %s1
  $region1: #{tpu_custom_call.1} parent=0
    #allocation4 [shape = 'u8[4096]{0}', space=vmem, size = 0x1000, scoped, tag = 'output window, operand 0']
    #allocation5 [shape = 's32[2]{0}', space=sflag, size = 0x8, scoped, tag = 'scoped memory for tpu_custom_call.1']
    %12 = vsyncpa [#allocation5], 0
    %s13 = scalar_lea.sflag [#allocation5], 1
    %14 = vsyncpa %s13, 0
    loop: start=0, step=1, limit=4
    $region2: #{tpu_custom_call.1} parent=1 // loop_pre_header
      _
    $region3: #{tpu_custom_call.1} parent=1 // loop_header
      %s16 = sphi 0, %s20
      %p17 = scmp.ge.s32.totalorder %s16, 4
      %s23 = sphi 0, %s42
      %s24 = sphi 0, %s38
      %s25 = sphi 0, %s34
      %s26 = sphi 0, %s23
      %s27 = sphi 0, %s24
      %s28 = sphi 0, %s25
      %s29 = sphi 0, %s26
      %s30 = sphi 0, %s27
      %s31 = sphi 0, %s28
      %s43 = sphi 0, %s43
      %s45 = sphi 0, %s43
      %s46 = sphi 0, %s45
      %s60 = sphi 0, %s46
      %s64 = sphi 0, %s64
      %s66 = sphi 0, %s64
      %s67 = sphi 0, %s66
      %s81 = sphi 0, %s67
      %s91 = sphi 0, %s93
      %s94 = sphi 0, %s91
      %s95 = sphi 0, %s94
      %s111 = sphi 0, %s95
      %s117 = sphi 0, %s119
      %s120 = sphi 0, %s117
      %s121 = sphi 0, %s120
      %s137 = sphi 0, %s121
      %s143 = sphi 0, %s145
      %s146 = sphi 0, %s143
      %s147 = sphi 0, %s146
      %s163 = sphi 0, %s147
      %s173 = sphi 0, %s175
      %s176 = sphi 0, %s173
      %s177 = sphi 0, %s176
      %s193 = sphi 0, %s177
    $region4: #{tpu_custom_call.1} parent=1 // loop_header_branch
      %19 = sbr.rel (%p17) target = $region8
    $region5: #{tpu_custom_call.1} parent=1 // loop_body
      %s21 = ssub.s32 %s16, 1
      %s22 = ssub.s32 %s16, 2
      %s32 = sadd.s32 1, %s25
      %p33 = scmp.ge.s32.totalorder %s32, 1
      %s34 = scalar_select %p33, 0, %s32
      %s35 = sadd.s32 1, %s24
      %s36 = scalar_select %p33, %s35, %s24
      %p37 = scmp.ge.s32.totalorder %s36, 2
      %s38 = scalar_select %p37, 0, %s36
      %s39 = sadd.s32 1, %s23
      %s40 = scalar_select %p37, %s39, %s23
      %p41 = scmp.ge.s32.totalorder %s40, 1
      %s42 = scalar_select %p41, 0, %s40
      %s44 = sadd.s32 %s43, 1
      %p47 = scmp.eq.s32.totalorder %s16, 1
      %p48 = scmp.ne.s32.totalorder %s43, %s45
      %p49 = scmp.eq.s32.totalorder %s16, 0
      %p50 = por %p48, %p49
      %p51 = scmp.ne.s32.totalorder %s43, %s45
      %p52 = scmp.eq.s32.totalorder %s21, 1
      %p53 = por %p51, %p52
      %p54 = scmp.ne.s32.totalorder %s45, %s46
      %p55 = scmp.eq.s32.totalorder %s21, 0
      %p56 = por %p54, %p55
      %p57 = scmp.ne.s32.totalorder %s45, %s46
      %p58 = scmp.eq.s32.totalorder %s22, 1
      %p59 = por %p57, %p58
      %p61 = scmp.ne.s32.totalorder %s46, %s60
      %p62 = scmp.eq.s32.totalorder %s22, 0
      %p63 = por %p61, %p62
      %s65 = sadd.s32 %s64, 1
      %p68 = scmp.eq.s32.totalorder %s16, 1
      %p69 = scmp.ne.s32.totalorder %s64, %s66
      %p70 = scmp.eq.s32.totalorder %s16, 0
      %p71 = por %p69, %p70
      %p72 = scmp.ne.s32.totalorder %s64, %s66
      %p73 = scmp.eq.s32.totalorder %s21, 1
      %p74 = por %p72, %p73
      %p75 = scmp.ne.s32.totalorder %s66, %s67
      %p76 = scmp.eq.s32.totalorder %s21, 0
      %p77 = por %p75, %p76
      %p78 = scmp.ne.s32.totalorder %s66, %s67
      %p79 = scmp.eq.s32.totalorder %s22, 1
      %p80 = por %p78, %p79
      %p82 = scmp.ne.s32.totalorder %s67, %s81
      %p83 = scmp.eq.s32.totalorder %s22, 0
      %p84 = por %p82, %p83
      %s85 = ssub.s32 %s24, %s38
      %s86 = ssub.s32 %s23, %s42
      %s87 = sor.u32 %s85, %s86
      %s88 = ssub.s32 %s25, %s34
      %s89 = sor.u32 %s87, %s88
      %p90 = scmp.eq.s32.totalorder %s89, 0
      %s92 = sadd.s32 %s91, 1
      %s93 = scalar_select %p90, %s91, %s92
      %p96 = pneg %p90
      %p97 = scmp.eq.s32.totalorder %s16, 1
      %p98 = por %p96, %p97
      %p99 = scmp.ne.s32.totalorder %s91, %s94
      %p100 = scmp.eq.s32.totalorder %s16, 0
      %p101 = por %p99, %p100
      %p102 = scmp.ne.s32.totalorder %s91, %s94
      %p103 = scmp.eq.s32.totalorder %s21, 1
      %p104 = por %p102, %p103
      %p105 = scmp.ne.s32.totalorder %s94, %s95
      %p106 = scmp.eq.s32.totalorder %s21, 0
      %p107 = por %p105, %p106
      %p108 = scmp.ne.s32.totalorder %s94, %s95
      %p109 = scmp.eq.s32.totalorder %s22, 1
      %p110 = por %p108, %p109
      %p112 = scmp.ne.s32.totalorder %s95, %s111
      %p113 = scmp.eq.s32.totalorder %s22, 0
      %p114 = por %p112, %p113
      %s115 = ssub.s32 %s23, %s42
      %p116 = scmp.eq.s32.totalorder %s115, 0
      %s118 = sadd.s32 %s117, 1
      %s119 = scalar_select %p116, %s117, %s118
      %p122 = pneg %p116
      %p123 = scmp.eq.s32.totalorder %s16, 1
      %p124 = por %p122, %p123
      %p125 = scmp.ne.s32.totalorder %s117, %s120
      %p126 = scmp.eq.s32.totalorder %s16, 0
      %p127 = por %p125, %p126
      %p128 = scmp.ne.s32.totalorder %s117, %s120
      %p129 = scmp.eq.s32.totalorder %s21, 1
      %p130 = por %p128, %p129
      %p131 = scmp.ne.s32.totalorder %s120, %s121
      %p132 = scmp.eq.s32.totalorder %s21, 0
      %p133 = por %p131, %p132
      %p134 = scmp.ne.s32.totalorder %s120, %s121
      %p135 = scmp.eq.s32.totalorder %s22, 1
      %p136 = por %p134, %p135
      %p138 = scmp.ne.s32.totalorder %s121, %s137
      %p139 = scmp.eq.s32.totalorder %s22, 0
      %p140 = por %p138, %p139
      %s141 = ssub.s32 %s23, %s42
      %p142 = scmp.eq.s32.totalorder %s141, 0
      %s144 = sadd.s32 %s143, 1
      %s145 = scalar_select %p142, %s143, %s144
      %p148 = pneg %p142
      %p149 = scmp.eq.s32.totalorder %s16, 1
      %p150 = por %p148, %p149
      %p151 = scmp.ne.s32.totalorder %s143, %s146
      %p152 = scmp.eq.s32.totalorder %s16, 0
      %p153 = por %p151, %p152
      %p154 = scmp.ne.s32.totalorder %s143, %s146
      %p155 = scmp.eq.s32.totalorder %s21, 1
      %p156 = por %p154, %p155
      %p157 = scmp.ne.s32.totalorder %s146, %s147
      %p158 = scmp.eq.s32.totalorder %s21, 0
      %p159 = por %p157, %p158
      %p160 = scmp.ne.s32.totalorder %s146, %s147
      %p161 = scmp.eq.s32.totalorder %s22, 1
      %p162 = por %p160, %p161
      %p164 = scmp.ne.s32.totalorder %s147, %s163
      %p165 = scmp.eq.s32.totalorder %s22, 0
      %p166 = por %p164, %p165
      %s167 = ssub.s32 %s24, %s38
      %s168 = ssub.s32 %s23, %s42
      %s169 = sor.u32 %s167, %s168
      %s170 = ssub.s32 %s25, %s34
      %s171 = sor.u32 %s169, %s170
      %p172 = scmp.eq.s32.totalorder %s171, 0
      %s174 = sadd.s32 %s173, 1
      %s175 = scalar_select %p172, %s173, %s174
      %p178 = pneg %p172
      %p179 = scmp.eq.s32.totalorder %s16, 1
      %p180 = por %p178, %p179
      %p181 = scmp.ne.s32.totalorder %s173, %s176
      %p182 = scmp.eq.s32.totalorder %s16, 0
      %p183 = por %p181, %p182
      %p184 = scmp.ne.s32.totalorder %s173, %s176
      %p185 = scmp.eq.s32.totalorder %s21, 1
      %p186 = por %p184, %p185
      %p187 = scmp.ne.s32.totalorder %s176, %s177
      %p188 = scmp.eq.s32.totalorder %s21, 0
      %p189 = por %p187, %p188
      %p190 = scmp.ne.s32.totalorder %s176, %s177
      %p191 = scmp.eq.s32.totalorder %s22, 1
      %p192 = por %p190, %p191
      %p194 = scmp.ne.s32.totalorder %s177, %s193
      %p195 = scmp.eq.s32.totalorder %s22, 0
      %p196 = por %p194, %p195
      %p197 = scmp.le.s32.totalorder 1, %s16
      %p198 = scmp.lt.s32.totalorder %s16, 3
      %p199 = pnand %p197, %p198
      %p200 = pneg %p199
      // Predicated region
      $region9: #{tpu_custom_call.1} parent=5 // pred_check
        _
      $region10: #{tpu_custom_call.1} parent=5 // pred_check_branch
        %202 = sbr.rel (%p199) target = $region12
      $region11: #{tpu_custom_call.1} parent=5 // pred_region
        %s203 = ssub.s32 %s16, 1
        // Predicated region
        $region13: #{tpu_custom_call.1} parent=11 // pred_check
          %p204 = pneg %p56
        $region14: #{tpu_custom_call.1} parent=11 // pred_check_branch
          %206 = sbr.rel (%p204) target = $region16
        $region15: #{tpu_custom_call.1} parent=11 // pred_region
          _
        $region16: #{tpu_custom_call.1} parent=11 // pred_fallthru
          _
        // Predicated region
        $region17: #{tpu_custom_call.1} parent=11 // pred_check
          %p207 = pneg %p77
        $region18: #{tpu_custom_call.1} parent=11 // pred_check_branch
          %209 = sbr.rel (%p207) target = $region20
        $region19: #{tpu_custom_call.1} parent=11 // pred_region
          _
        $region20: #{tpu_custom_call.1} parent=11 // pred_fallthru
          _
        // Predicated region
        $region21: #{tpu_custom_call.1} parent=11 // pred_check
          %p210 = pneg %p133
        $region22: #{tpu_custom_call.1} parent=11 // pred_check_branch
          %212 = sbr.rel (%p210) target = $region24
        $region23: #{tpu_custom_call.1} parent=11 // pred_region
          %p213 = scmp.lt.s32.totalorder %s26, 0
          %s214 = scalar_select %p213, %s26, 0
          %s215 = smul.addr %s214, 4
          %s216 = scalar_lea.vmem %s3, %s215
        $region24: #{tpu_custom_call.1} parent=11 // pred_fallthru
          _
        // Predicated region
        $region25: #{tpu_custom_call.1} parent=11 // pred_check
          %p217 = pneg %p159
        $region26: #{tpu_custom_call.1} parent=11 // pred_check_branch
          %219 = sbr.rel (%p217) target = $region28
        $region27: #{tpu_custom_call.1} parent=11 // pred_region
          %p220 = scmp.lt.s32.totalorder %s26, 0
          %s221 = scalar_select %p220, %s26, 0
          %s222 = smul.addr %s221, 8
          %s223 = scalar_lea.vmem %s4, %s222
        $region28: #{tpu_custom_call.1} parent=11 // pred_fallthru
          _
      $region12: #{tpu_custom_call.1} parent=5 // pred_fallthru
        _
      %p224 = scmp.lt.s32.totalorder %s16, 2
      // Predicated region
      $region29: #{tpu_custom_call.1} parent=5 // pred_check
        %p225 = pneg %p224
      $region30: #{tpu_custom_call.1} parent=5 // pred_check_branch
        %227 = sbr.rel (%p225) target = $region32
      $region31: #{tpu_custom_call.1} parent=5 // pred_region
        // Predicated region
        $region33: #{tpu_custom_call.1} parent=31 // pred_check
          %p228 = pneg %p101
        $region34: #{tpu_custom_call.1} parent=31 // pred_check_branch
          %230 = sbr.rel (%p228) target = $region36
        $region35: #{tpu_custom_call.1} parent=31 // pred_region
          %s231 = smul.u32 2, %s25
          %p232 = scmp.lt.s32.totalorder %s24, 1
          %s233 = scalar_select %p232, %s24, 1
          %p234 = scmp.lt.s32.totalorder %s23, 0
          %s235 = scalar_select %p234, %s23, 0
          %p236 = scmp.lt.s32.totalorder %s231, 1
          %s237 = scalar_select %p236, %s231, 1
          %s238 = smul.addr %s235, 10
          %s239 = sadd.s32 %s237, %s238
          %s240 = smul.addr %s233, 10
          %s241 = sadd.s32 %s239, %s240
          %s242 = smul.addr %s241, 4
          %s243 = scalar_lea.vmem %s2, %s242
          %s244 = smul.u32 2, %s25
        $region36: #{tpu_custom_call.1} parent=31 // pred_fallthru
          _
      $region32: #{tpu_custom_call.1} parent=5 // pred_fallthru
        _
      %p245 = scmp.le.s32.totalorder 1, %s16
      %p246 = scmp.lt.s32.totalorder %s16, 3
      %p247 = pnand %p245, %p246
      %p248 = pneg %p247
      // Predicated region
      $region37: #{tpu_custom_call.1} parent=5 // pred_check
        _
      $region38: #{tpu_custom_call.1} parent=5 // pred_check_branch
        %250 = sbr.rel (%p247) target = $region40
      $region39: #{tpu_custom_call.1} parent=5 // pred_region
        %s251 = ssub.s32 %s16, 1
        %p252 = pneg %p56
        %p253 = pneg %p53
        %p254 = pneg %p77
        %p255 = pneg %p74
        %s256 = smul.u32 2, %s28
        %p257 = scmp.lt.s32.totalorder %s27, 1
        %s258 = scalar_select %p257, %s27, 1
        %p259 = scmp.lt.s32.totalorder %s26, 0
        %s260 = scalar_select %p259, %s26, 0
        %p261 = scmp.lt.s32.totalorder %s256, 1
        %s262 = scalar_select %p261, %s256, 1
        %s263 = smul.addr %s260, 10
        %s264 = sadd.s32 %s262, %s263
        %s265 = smul.addr %s258, 10
        %s266 = sadd.s32 %s264, %s265
        %s267 = smul.addr %s266, 4
        %s268 = scalar_lea.vmem %s2, %s267
        %p269 = pneg %p107
        %p270 = pneg %p104
        %p271 = scmp.lt.s32.totalorder %s26, 0
        %s272 = scalar_select %p271, %s26, 0
        %s273 = smul.addr %s272, 4
        %s274 = scalar_lea.vmem %s3, %s273
        %p275 = pneg %p133
        %p276 = pneg %p130
        %p277 = scmp.lt.s32.totalorder %s26, 0
        %s278 = scalar_select %p277, %s26, 0
        %s279 = smul.addr %s278, 8
        %s280 = scalar_lea.vmem %s4, %s279
        %p281 = pneg %p159
        %p282 = pneg %p156
        %p283 = pneg %p189
        %p284 = pneg %p186
        %s285 = sand.u32 %s176, 1
        %s286 = scalar_lea.sflag [#allocation5], %s285
        %s287 = sand.u32 %s176, 1
        %s288 = smul.addr %s287, 4
        %s289 = scalar_lea.vmem [#allocation4], %s288
        %s290 = smul.u32 2, %s28
        %p291 = scmp.lt.s32.totalorder %s27, 1
        %s292 = scalar_select %p291, %s27, 1
        %p293 = scmp.lt.s32.totalorder %s26, 0
        %s294 = scalar_select %p293, %s26, 0
        %p295 = scmp.lt.s32.totalorder %s290, 1
        %s296 = scalar_select %p295, %s290, 1
        %s297 = smul.addr %s294, 10
        %s298 = sadd.s32 %s296, %s297
        %s299 = smul.addr %s292, 10
        %s300 = sadd.s32 %s298, %s299
        %s301 = smul.addr %s300, 4
        %s302 = scalar_lea.vmem %s2, %s301
        %s303 = smul.u32 2, %s28
        %p304 = scmp.lt.s32.totalorder %s26, 0
        %s305 = scalar_select %p304, %s26, 0
        %s306 = smul.addr %s305, 4
        %s307 = scalar_lea.vmem %s3, %s306
        %p308 = scmp.lt.s32.totalorder %s26, 0
        %s309 = scalar_select %p308, %s26, 0
        %s310 = smul.addr %s309, 8
        %s311 = scalar_lea.vmem %s4, %s310
        %s312 = smul.u32 2, %s28
        %v314 = vld [vmem:[%s307] sm:$0xf]
        %v315 = vld [vmem:[%s302] sm:$0xff]
        %v316 = vld [vmem:[%s302 + $0x8] sm:$0xff]
        %v317 = vld [vmem:[%s302 + $0x10] sm:$0xff]
        %v318 = vld [vmem:[%s302 + $0x18] sm:$0xff]
        %v319 = vld [vmem:[%s302 + $0x20] sm:$0x33]
        %v320 = vld [vmem:[%s311] sm:$0xff]
        %322 = vset.pattern.permute.xlu0 0
        %323 = vperm.xlu0 %322, %v320
        %v324 = vpop.permute.xlu0 %323
        %v331 = vunpack.c.l.b16 %v315
        %v332 = vunpack.c.h.b16 %v315
        %v333 = vunpack.c.l.b16 %v316
        %v334 = vunpack.c.h.b16 %v316
        %v335 = vunpack.c.l.b16 %v317
        %v336 = vunpack.c.h.b16 %v317
        %v337 = vunpack.c.l.b16 %v318
        %v338 = vunpack.c.h.b16 %v318
        %v339 = vunpack.c.l.b16 %v319
        %v340 = vunpack.c.h.b16 %v319
        %v341 = vpack.c.b16 %v333, %v331
        %v342 = vpack.c.b16 %v334, %v332
        %v343 = vpack.c.b16 %v337, %v335
        %v344 = vpack.c.b16 %v338, %v336
        %v345 = vpack.c.b16 %v339, %v339
        %v346 = vpack.c.b16 %v340, %v340
        %vm351 = vcmask 293888
        %v353 = vsel %vm351, %v314, 0
        %vm355 = vcmask 1041408
        %v357 = vsel %vm355, %v345, 0
        %v360 = vsel %vm355, %v346, 0
        %362 = vmatpush.bf16.msra.mxu0 0
        %363 = vmatpush.bf16.msra.mxu0 0
        %364 = vmatpush.bf16.msra.mxu0 0
        %365 = vmatpush.bf16.msra.mxu0 0
        %366 = vmatpush.bf16.msra.mxu0 0
        %367 = vmatpush.bf16.msra.mxu0 %v357
        %368 = vmatpush.bf16.msra.mxu0 %v343
        %369 = vmatpush.bf16.msra.mxu0 %v341
        %370 = vmatmul.bf16.gmra.mxu0 %v353
        %v371 = vpop.f32.mrf.mxu0
        %v372 = vadd.f32 %v324, %v371
        %v373 = vpop.f32.mrf.mxu0
        %374 = vdwg.mxu0
        %375 = vmatpush.bf16.msra.mxu0 0
        %376 = vmatpush.bf16.msra.mxu0 0
        %377 = vmatpush.bf16.msra.mxu0 0
        %378 = vmatpush.bf16.msra.mxu0 0
        %379 = vmatpush.bf16.msra.mxu0 0
        %380 = vmatpush.bf16.msra.mxu0 %v360
        %381 = vmatpush.bf16.msra.mxu0 %v344
        %382 = vmatpush.bf16.msra.mxu0 %v342
        %383 = vmatmul.bf16.gmra.mxu0 %v353
        %v384 = vpop.f32.mrf.mxu0
        %v385 = vadd.f32 %v324, %v384
        %v386 = vpop.f32.mrf.mxu0
        %387 = vdwg.mxu0
        %s388 = sld [smem:[#allocation2]]
        %v389 = vstv %s388
        %v390 = vmul.f32 %v372, %v389
        %v391 = vmul.f32 %v385, %v389
        %v392 = vround.ne.pseudo %v390
        %v393 = vround.ne.pseudo %v391
        %s394 = sld [smem:[#allocation3]]
        %v395 = vstv %s394
        %v396 = vadd.f32 %v392, %v395
        %v397 = vadd.f32 %v393, %v395
        %v398 = vmax.f32 %v396, -128.0
        %v399 = vmax.f32 %v397, -128.0
        %v400 = vmin.f32 %v398, 127.0
        %v401 = vmin.f32 %v399, 127.0
        %v402 = vmax.f32 %v400, -128.0
        %v403 = vmax.f32 %v401, -128.0
        %v404 = vmin.f32 %v402, 127.0
        %v405 = vmin.f32 %v403, 127.0
        %v406 = vcvt.f32.s32.to.zero.pseudo %v404
        %v407 = vcvt.f32.s32.to.zero.pseudo %v405
        %v408 = vpack.c.b16 %v407, %v406
        %v409 = vpack.c.b8 %v408, %v408
        %410 = vst [vmem:[%s289] sm:$0xf] %v409
        %s411 = sand.u32 %s176, 1
        %s412 = scalar_lea.sflag [#allocation5], %s411
        %s413 = sand.u32 %s176, 1
        %s414 = smul.addr %s413, 4
        %s415 = scalar_lea.vmem [#allocation4], %s414
        // Predicated region
        $region41: #{tpu_custom_call.1} parent=39 // pred_check
          %p416 = pneg %p186
        $region42: #{tpu_custom_call.1} parent=39 // pred_check_branch
          %418 = sbr.rel (%p416) target = $region44
        $region43: #{tpu_custom_call.1} parent=39 // pred_region
          %s419 = smul.u32 2, %s28
          %421 = vsyncadd %s412, 0
          %s422 = smul.addr %s26, 2
          %s423 = sadd.s32 %s419, %s422
          %s424 = smul.addr %s27, 2
          %s425 = sadd.s32 %s423, %s424
          %s426 = smul.addr %s425, 2
          %s427 = scalar_lea.hbm %s5, %s426
          %s429 = sshll.u32 %s415, 4
          %s430 = int_to_ptr.vmem [resolvable:$true] %s429
          %s431 = sshll.u32 %s427, 4
          %s432 = int_to_ptr.hbm [resolvable:$true] %s431
          %434 = dma.vmem_to_hbm [thread:$0]  %s430, 64, %s432, %s412
        $region44: #{tpu_custom_call.1} parent=39 // pred_fallthru
          _
      $region40: #{tpu_custom_call.1} parent=5 // pred_fallthru
        _
      %p435 = scmp.le.s32.totalorder 2, %s16
      // Predicated region
      $region45: #{tpu_custom_call.1} parent=5 // pred_check
        %p436 = pneg %p435
      $region46: #{tpu_custom_call.1} parent=5 // pred_check_branch
        %438 = sbr.rel (%p436) target = $region48
      $region47: #{tpu_custom_call.1} parent=5 // pred_region
        %s439 = ssub.s32 %s16, 2
        // Predicated region
        $region49: #{tpu_custom_call.1} parent=47 // pred_check
          %p440 = pneg %p192
        $region50: #{tpu_custom_call.1} parent=47 // pred_check_branch
          %442 = sbr.rel (%p440) target = $region52
        $region51: #{tpu_custom_call.1} parent=47 // pred_region
          %s443 = sand.u32 %s177, 1
          %s444 = scalar_lea.sflag [#allocation5], %s443
          %s445 = sand.u32 %s177, 1
          %s446 = smul.addr %s445, 4
          %s447 = scalar_lea.vmem [#allocation4], %s446
          %449 = dma.done %s444, 64
        $region52: #{tpu_custom_call.1} parent=47 // pred_fallthru
          _
      $region48: #{tpu_custom_call.1} parent=5 // pred_fallthru
        _
    $region6: #{tpu_custom_call.1} parent=1 // loop_footer
      %s20 = sadd.s32 1, %s16
    $region7: #{tpu_custom_call.1} parent=1 // loop_footer_branch
      %15 = sbr.rel target = $region3
    $region8: #{tpu_custom_call.1} parent=1 // loop_exit
      _
    %450 = vsyncpa [#allocation5], 1
    %s451 = scalar_lea.sflag [#allocation5], 1
    %452 = vsyncpa %s451, 1

</llo_original>
